<compile_context>
chip_gen: v5e
topology: v5e:2x2
jax: 0.10.0
libtpu: 0.0.40
codegen_flags: <defaults>
</compile_context>

<pallas_src>
import functools

import jax
import jax.numpy as jnp
from jax.experimental import pallas as pl
from jax.experimental.pallas import tpu as pltpu


def _global_avg_pool_kernel(x_ref, o_ref, *, inv_hw):
    # x_ref: (TM, HW) input block.  o_ref: (1, TM) lane-dense output block.
    # Fused f32-accumulating sum over the lane axis, then scale by 1/(H*W).
    s = jnp.sum(x_ref[...], axis=-1, dtype=jnp.float32)       # (TM,)
    o_ref[...] = (s * inv_hw).astype(o_ref.dtype)[None, :]    # (1, TM)


def _choose_row_block(nc, hw, itemsize, target_bytes=4 * 1024 * 1024):
    """Rows (of length H*W) per grid step.

    Full extent if the whole problem fits in one ~target_bytes block,
    otherwise a multiple of 128 sized so one (TM, HW) block is ~target_bytes.
    """
    if nc * hw * itemsize <= target_bytes:
        return nc                       # single full-extent block
    rows = max(1, target_bytes // (hw * itemsize))
    tm = (rows // 128) * 128            # multiple of 128 -> lane-dense output
    if tm == 0:
        # Very large H*W: a 128-row block overshoots the target but still fits
        # comfortably in VMEM for any realistic global-pool spatial size.
        # TODO(synk): also block the H*W (reduction) axis if spatial is ever huge.
        tm = 128
    return min(tm, nc)


def global_avg_pool2d(x):
    """Pallas equivalent of F.avg_pool2d(x, kernel_size=x.shape[2:]) (NCHW)."""
    N, C, H, W = x.shape
    nc = N * C
    hw = H * W
    itemsize = jnp.dtype(x.dtype).itemsize

    tm = _choose_row_block(nc, hw, itemsize)
    grid = (pl.cdiv(nc, tm),)

    x2d = x.reshape(nc, hw)             # free: contiguous NCHW -> (N*C, H*W)

    kernel = functools.partial(_global_avg_pool_kernel, inv_hw=1.0 / float(hw))

    out = pl.pallas_call(
        kernel,
        out_shape=jax.ShapeDtypeStruct((1, nc), x.dtype),
        grid_spec=pltpu.PrefetchScalarGridSpec(
            num_scalar_prefetch=0,
            grid=grid,
            in_specs=[pl.BlockSpec((tm, hw), lambda i: (i, 0))],
            out_specs=pl.BlockSpec((1, tm), lambda i: (0, i)),
        ),
        compiler_params=pltpu.CompilerParams(
            dimension_semantics=("parallel",),
        ),
        cost_estimate=pl.CostEstimate(
            flops=nc * hw,
            transcendentals=0,
            bytes_accessed=nc * hw * itemsize + nc * itemsize,
        ),
    )(x2d)

    # Glue reshape to PyTorch's (N, C, 1, 1) output shape (free).
    return out.reshape(N, C, 1, 1)


if __name__ == "__main__":
    key = jax.random.PRNGKey(0)
    N, C, H, W = 2, 4, 16, 16
    x = jax.random.normal(key, (N, C, H, W), dtype=jnp.float32)

    out = global_avg_pool2d(x)
    out = jax.block_until_ready(out)

    # Sanity check against a plain-JAX reference.
    ref = jnp.mean(x, axis=(2, 3), keepdims=True)
    assert out.shape == (N, C, 1, 1), out.shape
    assert jnp.allclose(out, ref, atol=1e-5, rtol=1e-5)

    print("KERNEL_OK")
</pallas_src>

<mosaic_0001>
module attributes {stable_mosaic.version = 11 : i64} {
  func.func @_global_avg_pool_kernel(%arg0: i32, %arg1: memref<8x256xf32, #tpu.memory_space<vmem>>, %arg2: memref<1x8xf32, #tpu.memory_space<vmem>>) attributes {dimension_semantics = [#tpu.dimension_semantics<parallel>], iteration_bounds = array<i64: 1>, scalar_prefetch = 0 : i64, scratch_operands = 0 : i64, tpu.core_type = #tpu.core_type<tc>, window_params = [{transform_indices = @transform_0, window_bounds = array<i64: 8, 256>}, {transform_indices = @transform_1, window_bounds = array<i64: 1, 8>}]} {
    %c0 = arith.constant 0 : index
    %c0_0 = arith.constant 0 : index
    %0 = vector.load %arg1[%c0, %c0_0] : memref<8x256xf32, #tpu.memory_space<vmem>>, vector<8x256xf32>
    %cst = arith.constant dense<0.000000e+00> : vector<8xf32>
    %1 = vector.multi_reduction <add>, %0, %cst [1] : vector<8x256xf32> to vector<8xf32>
    %cst_1 = arith.constant 3.906250e-03 : f32
    %2 = vector.broadcast %cst_1 : f32 to vector<8xf32>
    %3 = arith.mulf %1, %2 : vector<8xf32>
    %4 = vector.shape_cast %3 : vector<8xf32> to vector<1x8xf32>
    %c0_2 = arith.constant 0 : index
    %c0_3 = arith.constant 0 : index
    %5 = vector.load %arg2[%c0_2, %c0_3] : memref<1x8xf32, #tpu.memory_space<vmem>>, vector<1x8xf32>
    tpu.vector_store %arg2[%c0_2, %c0_3], %4 {strides = array<i32>} : memref<1x8xf32, #tpu.memory_space<vmem>>, vector<1x8xf32>,
    return
  }
  func.func @transform_0(%arg0: i32) -> (i32, i32) {
    %c0_i32 = arith.constant 0 : i32
    %c0_i32_0 = arith.constant 0 : i32
    return %arg0, %c0_i32 : i32, i32
  }
  func.func @transform_1(%arg0: i32) -> (i32, i32) {
    %c0_i32 = arith.constant 0 : i32
    %c0_i32_0 = arith.constant 0 : i32
    return %c0_i32, %arg0 : i32, i32
  }
}

</mosaic_0001>

<llo_original>
// kernel: tpu_custom_call.1
$region0: #{tpu_custom_call.1}
  #allocation0 [shape = 'u32[]', space=smem, size = 0x4, offset = 0x4, fixed_abs, tag = 'smem constant byte address 0x4 - core index']
  #allocation1 [shape = 'u32[72,128]{1,0:T(1,128)}', space=vmem, size = 0x9000, scoped, tag = 'internal scratch']
  %s0 = inlined_call_operand.hbm [shape: f32[8,256], index: 0, kind: input, shape index: {}]
  %s1 = inlined_call_operand.hbm [shape: f32[1,8], index: 1, kind: output, shape index: {}]
  %s2 = sld [smem:[#allocation0]]
  $region18: #{tpu_custom_call.1} parent=0
    _
  %s4 = ssub.s32 1, %s2
  %s5 = scalar_select 0, %s4, %s2
  $region1: #{tpu_custom_call.1} parent=0
    #allocation2 [shape = 'u8[8192]{0}', space=vmem, size = 0x2000, scoped, tag = 'input window, operand 0, single buffered']
    #allocation3 [shape = 's32[1]{0}', space=sflag, size = 0x4, scoped, tag = 'scoped memory for tpu_custom_call.1']
    #allocation4 [shape = 's32[1]{0}', space=sflag, size = 0x4, scoped, tag = 'scoped memory for tpu_custom_call.1']
    #allocation5 [shape = 'u8[512]{0}', space=vmem, size = 0x400, scoped, tag = 'output window, operand 0, single buffered']
    %6 = vsyncpa [#allocation3], 0
    %7 = vsyncpa [#allocation4], 0
    // Predicated region
    $region2: #{tpu_custom_call.1} parent=1 // pred_check
      _
    $region3: #{tpu_custom_call.1} parent=1 // pred_check_branch
      %9 = sbr.rel (0) target = $region5
    $region4: #{tpu_custom_call.1} parent=1 // pred_region
      %11 = vsyncadd [#allocation3], 0
      %s13 = sshll.u32 %s0, 4
      %s14 = int_to_ptr.hbm [resolvable:$true] %s13
      %s15 = sshll.u32 [#allocation2], 4
      %s16 = int_to_ptr.vmem [resolvable:$true] %s15
      %18 = dma.hbm_to_vmem [thread:$0]  %s14, 256, %s16, [#allocation3]
    $region5: #{tpu_custom_call.1} parent=1 // pred_fallthru
      _
    // Predicated region
    $region6: #{tpu_custom_call.1} parent=1 // pred_check
      _
    $region7: #{tpu_custom_call.1} parent=1 // pred_check_branch
      %20 = sbr.rel (0) target = $region9
    $region8: #{tpu_custom_call.1} parent=1 // pred_region
      %22 = dma.done [#allocation3], 256
    $region9: #{tpu_custom_call.1} parent=1 // pred_fallthru
      _
    %v23 = vld [vmem:[#allocation2] sm:$0xff]
    %v24 = vld [vmem:[#allocation2 + $0x8] sm:$0xff]
    %v25 = vadd.f32 %v23, %v24
    %26 = vadd.xlane.f32.xlu0 %v25
    %v27 = vpop.xlane.xlu0 %26
    %v28 = vmul.f32 %v27, 0.00390625
    %v30 = vlaneseq
    %v31 = vand.u32 %v30, 127
    %v32 = vperm.slane %v28, %v31
    %vm34 = vcmask 57344
    %35 = vst.msk [vmem:[#allocation5] sm:$0x1] %vm34, %v32
    // Predicated region
    $region10: #{tpu_custom_call.1} parent=1 // pred_check
      _
    $region11: #{tpu_custom_call.1} parent=1 // pred_check_branch
      %37 = sbr.rel (0) target = $region13
    $region12: #{tpu_custom_call.1} parent=1 // pred_region
      %39 = vsyncadd [#allocation4], 0
      %s41 = sshll.u32 [#allocation5], 4
      %s42 = int_to_ptr.vmem [resolvable:$true] %s41
      %s43 = sshll.u32 %s1, 4
      %s44 = int_to_ptr.hbm [resolvable:$true] %s43
      %46 = dma.vmem_to_hbm [thread:$0]  %s42, 16, %s44, [#allocation4]
    $region13: #{tpu_custom_call.1} parent=1 // pred_fallthru
      _
    // Predicated region
    $region14: #{tpu_custom_call.1} parent=1 // pred_check
      _
    $region15: #{tpu_custom_call.1} parent=1 // pred_check_branch
      %48 = sbr.rel (0) target = $region17
    $region16: #{tpu_custom_call.1} parent=1 // pred_region
      %50 = dma.done [#allocation4], 16
    $region17: #{tpu_custom_call.1} parent=1 // pred_fallthru
      _
    %51 = vsyncpa [#allocation3], 1
    %52 = vsyncpa [#allocation4], 1

</llo_original>
